<compile_context>
chip_gen: v7x
topology: tpu7x:2x2x1
jax: 0.10.0
libtpu: 0.0.40
codegen_flags: <defaults>
</compile_context>

<pallas_src>
import functools
import math

import numpy as np
import jax
import jax.numpy as jnp
from jax.experimental import pallas as pl
from jax.experimental.pallas import tpu as pltpu


_COMPUTE_DTYPE = jnp.bfloat16      # MXU operand dtype; accumulation is f32


# ----------------------------------------------------------------------------
# sincos positional embedding (same math as the reference numpy helpers)
# ----------------------------------------------------------------------------
def get_1d_sincos_pos_embed_from_grid(embed_dim, pos):
    assert embed_dim % 2 == 0
    omega = np.arange(embed_dim // 2, dtype=float)
    omega /= embed_dim / 2.0
    omega = 1.0 / 10000 ** omega
    pos = pos.reshape(-1)
    out = np.einsum("m,d->md", pos, omega)
    return np.concatenate([np.sin(out), np.cos(out)], axis=1)


def get_2d_sincos_pos_embed(embed_dim, grid_size):
    grid_h = np.arange(grid_size, dtype=float)
    grid_w = np.arange(grid_size, dtype=float)
    grid_w, grid_h = np.meshgrid(grid_w, grid_h)
    emb_h = get_1d_sincos_pos_embed_from_grid(embed_dim // 2, grid_h)
    emb_w = get_1d_sincos_pos_embed_from_grid(embed_dim // 2, grid_w)
    return np.concatenate([emb_h, emb_w], axis=1)  # (grid*grid, embed_dim)


# ----------------------------------------------------------------------------
# shared LayerNorm math (used inside the kernels and by the JAX reference)
# ----------------------------------------------------------------------------
def _layernorm(x, w, b, eps=1e-5):
    mu = jnp.mean(x, axis=-1, keepdims=True)
    var = jnp.mean((x - mu) ** 2, axis=-1, keepdims=True)
    return (x - mu) * jax.lax.rsqrt(var + eps) * w + b


# ----------------------------------------------------------------------------
# batch-tile selection: big BN for arithmetic intensity, but keep >= 2 batch
# tiles when possible so the "parallel" axis shards across v7x's 2 TCs.
# ----------------------------------------------------------------------------
def _pick_batch_tile(batch, tokens, target_rows=512):
    best = 1
    for bt in range(1, batch + 1):
        if batch % bt == 0 and bt * tokens <= target_rows:
            best = bt
    if best == batch and batch > 1:
        # keep at least two batch tiles for megacore sharding on v7x
        for bt in range(best - 1, 0, -1):
            if batch % bt == 0:
                return bt
    return best


# ----------------------------------------------------------------------------
# explicit scoped-VMEM budget from the actual block footprint
# ----------------------------------------------------------------------------
def _vmem_limit_bytes(bt, tokens, D, Dh):
    BN = bt * tokens
    f32, bf16 = 4, 2
    layer_w = bf16 * (D * 3 * D + D * D + D * Dh + Dh * D)     # bf16 MXU weights
    layer_b = f32 * (3 * D + D + Dh + D + 4 * D)               # biases + LN params
    weights = 2 * (layer_w + layer_b)                          # double-buffered
    toks = 3 * BN * D * f32                                    # token input (x2) + output block
    interm = (BN * 3 * D + 2 * bt * tokens * tokens + BN * Dh + 4 * BN * D) * f32
    est = weights + toks + interm
    # cap at v7x physical VMEM (64 MiB); floor at the v6e/v7x default (32 MiB)
    return max(32 << 20, min(64 << 20, int(est * 1.5)))


# ----------------------------------------------------------------------------
# kernel 1: patch embed (+ fixed sincos pos-embed add)
# ----------------------------------------------------------------------------
def patch_embed_kernel(patches_ref, wpatch_ref, bpatch_ref, pos_ref, o_ref,
                       *, batch_per_tile, tokens):
    cdt = _COMPUTE_DTYPE
    tok = jnp.dot(patches_ref[...].astype(cdt), wpatch_ref[...],
                  preferred_element_type=jnp.float32) + bpatch_ref[...]
    D = tok.shape[-1]
    tok = tok.reshape(batch_per_tile, tokens, D) + pos_ref[...][None]
    o_ref[...] = tok.reshape(batch_per_tile * tokens, D)


def run_patch_embed(patches, wpatch, bpatch, pos, *, batch_tile, tokens):
    BN, P = patches.shape
    D = wpatch.shape[1]
    nb = BN // (batch_tile * tokens)
    kernel = functools.partial(patch_embed_kernel,
                               batch_per_tile=batch_tile, tokens=tokens)
    return pl.pallas_call(
        kernel,
        out_shape=jax.ShapeDtypeStruct((BN, D), jnp.float32),
        grid=(nb,),
        in_specs=[
            pl.BlockSpec((batch_tile * tokens, P), lambda i: (i, 0)),
            pl.BlockSpec((P, D), lambda i: (0, 0)),
            pl.BlockSpec((1, D), lambda i: (0, 0)),
            pl.BlockSpec((tokens, D), lambda i: (0, 0)),
        ],
        out_specs=pl.BlockSpec((batch_tile * tokens, D), lambda i: (i, 0)),
        compiler_params=pltpu.CompilerParams(
            dimension_semantics=("parallel",)),
    )(patches, wpatch, bpatch, pos)


# ----------------------------------------------------------------------------
# kernel 2: fused transformer stack (+ final LayerNorm)
# ----------------------------------------------------------------------------
def transformer_stack_kernel(
    tok_ref,
    ln1w_ref, ln1b_ref, wqkv_ref, bqkv_ref, wproj_ref, bproj_ref,
    ln2w_ref, ln2b_ref, wfc1_ref, bfc1_ref, wfc2_ref, bfc2_ref,
    normw_ref, normb_ref,
    o_ref,
    *, num_heads, batch_per_tile, tokens_per_sample,
):
    layer = pl.program_id(1)
    last = pl.num_programs(1) - 1
    bt, N, H = batch_per_tile, tokens_per_sample, num_heads
    cdt = _COMPUTE_DTYPE

    # layer 0: patch-embedded tokens become resident in the output block,
    # which has a constant block index along the depth axis (stays in VMEM,
    # written back to HBM only once per batch tile).
    @pl.when(layer == 0)
    def _():
        o_ref[...] = tok_ref[...]

    x = o_ref[...]                       # (bt*N, D) f32, batch merged into rows
    BN, D = x.shape
    hd = D // H
    scale = 1.0 / math.sqrt(hd)

    # --- attention branch -----------------------------------------------------
    xn = _layernorm(x, ln1w_ref[0, 0], ln1b_ref[0, 0])
    qkv = jnp.dot(xn.astype(cdt), wqkv_ref[0],
                  preferred_element_type=jnp.float32) + bqkv_ref[0, 0]  # (BN, 3D)

    heads = []
    for h in range(H):   # static loop; see TODO(synk) at file top
        qh = qkv[:, h * hd:(h + 1) * hd].reshape(bt, N, hd).astype(cdt)
        kh = qkv[:, D + h * hd:D + (h + 1) * hd].reshape(bt, N, hd).astype(cdt)
        vh = qkv[:, 2 * D + h * hd:2 * D + (h + 1) * hd].reshape(bt, N, hd).astype(cdt)
        s = jnp.einsum("bnd,bmd->bnm", qh, kh,
                       preferred_element_type=jnp.float32) * scale
        m = jnp.max(s, axis=-1, keepdims=True)
        p = jnp.exp(s - m)
        inv = pl.reciprocal(jnp.sum(p, axis=-1, keepdims=True), approx=True)
        a = (p * inv).astype(cdt)
        oh = jnp.einsum("bnm,bmd->bnd", a, vh,
                        preferred_element_type=jnp.float32)
        heads.append(oh.reshape(BN, hd).astype(cdt))

    # assemble heads along lanes and do ONE full-K (D) projection matmul
    att_in = jnp.concatenate(heads, axis=-1)                       # (BN, D) bf16
    att = jnp.dot(att_in, wproj_ref[0],
                  preferred_element_type=jnp.float32) + bproj_ref[0, 0]
    x = x + att

    # --- MLP branch -------------------------------------------------------------
    xn2 = _layernorm(x, ln2w_ref[0, 0], ln2b_ref[0, 0])
    h1 = jnp.dot(xn2.astype(cdt), wfc1_ref[0],
                 preferred_element_type=jnp.float32) + bfc1_ref[0, 0]
    h1 = jax.nn.gelu(h1, approximate=False)        # nn.GELU default (exact erf)
    x = x + (jnp.dot(h1.astype(cdt), wfc2_ref[0],
                     preferred_element_type=jnp.float32) + bfc2_ref[0, 0])

    @pl.when(layer < last)
    def _():
        o_ref[...] = x

    @pl.when(layer == last)
    def _():
        o_ref[...] = _layernorm(x, normw_ref[0], normb_ref[0])


def run_transformer_stack(tokens, stacked, normw, normb,
                          *, num_heads, batch_tile, tokens_per_sample, depth):
    BN_total, D = tokens.shape
    Dh = stacked["wfc1"].shape[-1]
    bt = batch_tile
    nb = BN_total // (bt * tokens_per_sample)

    kernel = functools.partial(
        transformer_stack_kernel,
        num_heads=num_heads, batch_per_tile=bt,
        tokens_per_sample=tokens_per_sample,
    )

    rows2 = lambda i, l: (i, 0)
    const2 = lambda i, l: (0, 0)
    layer3 = lambda i, l: (l, 0, 0)

    in_specs = [
        pl.BlockSpec((bt * tokens_per_sample, D), rows2),   # initial tokens
        pl.BlockSpec((1, 1, D), layer3),        # ln1 weight
        pl.BlockSpec((1, 1, D), layer3),        # ln1 bias
        pl.BlockSpec((1, D, 3 * D), layer3),    # qkv weight (bf16)
        pl.BlockSpec((1, 1, 3 * D), layer3),    # qkv bias
        pl.BlockSpec((1, D, D), layer3),        # proj weight (bf16)
        pl.BlockSpec((1, 1, D), layer3),        # proj bias
        pl.BlockSpec((1, 1, D), layer3),        # ln2 weight
        pl.BlockSpec((1, 1, D), layer3),        # ln2 bias
        pl.BlockSpec((1, D, Dh), layer3),       # fc1 weight (bf16)
        pl.BlockSpec((1, 1, Dh), layer3),       # fc1 bias
        pl.BlockSpec((1, Dh, D), layer3),       # fc2 weight (bf16)
        pl.BlockSpec((1, 1, D), layer3),        # fc2 bias
        pl.BlockSpec((1, D), const2),           # final norm weight
        pl.BlockSpec((1, D), const2),           # final norm bias
    ]
    out_specs = pl.BlockSpec((bt * tokens_per_sample, D), rows2)

    return pl.pallas_call(
        kernel,
        out_shape=jax.ShapeDtypeStruct((BN_total, D), jnp.float32),
        grid=(nb, depth),
        in_specs=in_specs,
        out_specs=out_specs,
        compiler_params=pltpu.CompilerParams(
            dimension_semantics=("parallel", "arbitrary"),
            vmem_limit_bytes=_vmem_limit_bytes(bt, tokens_per_sample, D, Dh)),
    )(
        tokens,
        stacked["ln1w"], stacked["ln1b"],
        stacked["wqkv"], stacked["bqkv"],
        stacked["wproj"], stacked["bproj"],
        stacked["ln2w"], stacked["ln2b"],
        stacked["wfc1"], stacked["bfc1"],
        stacked["wfc2"], stacked["bfc2"],
        normw, normb,
    )


# ----------------------------------------------------------------------------
# VisionTransformer wrapper (masks=None path; image, num_frames=1)
# ----------------------------------------------------------------------------
class ViTPallas:
    def __init__(self, img_size=32, patch_size=8, in_chans=4, embed_dim=32,
                 depth=2, num_heads=4, mlp_ratio=4.0, init_std=0.02, seed=0):
        self.img_size = img_size
        self.patch_size = patch_size
        self.in_chans = in_chans
        self.embed_dim = embed_dim
        self.depth = depth
        self.num_heads = num_heads
        grid_size = img_size // patch_size
        self.num_patches = grid_size * grid_size
        hidden = int(embed_dim * mlp_ratio)

        key = jax.random.PRNGKey(seed)

        def trunc_normal(k, shape, std=init_std):
            return jax.random.truncated_normal(k, -2.0, 2.0, shape, jnp.float32) * std

        keys = iter(jax.random.split(key, 4 + depth * 4))

        # patch-embed conv weight [D, C, ps, ps] -> flattened [C*ps*ps, D]
        D, C, ps = embed_dim, in_chans, patch_size
        w_conv = trunc_normal(next(keys), (D, C, ps, ps))
        self.w_patch = jnp.transpose(w_conv.reshape(D, C * ps * ps), (1, 0))
        self.b_patch = jnp.zeros((1, D), jnp.float32)

        # fixed sincos pos-embed, passed once as (N, D)
        self.pos_embed = jnp.asarray(
            get_2d_sincos_pos_embed(embed_dim, grid_size), jnp.float32)

        # per-layer params kept in f32 (for the pure-JAX reference) ...
        self.blocks = []
        for layer_id in range(depth):
            rescale = 1.0 / math.sqrt(2.0 * (layer_id + 1))
            p = {
                "ln1w": jnp.ones((1, D), jnp.float32),
                "ln1b": jnp.zeros((1, D), jnp.float32),
                "wqkv": jnp.transpose(trunc_normal(next(keys), (3 * D, D)), (1, 0)),
                "bqkv": jnp.zeros((1, 3 * D), jnp.float32),
                "wproj": jnp.transpose(trunc_normal(next(keys), (D, D)), (1, 0)) * rescale,
                "bproj": jnp.zeros((1, D), jnp.float32),
                "ln2w": jnp.ones((1, D), jnp.float32),
                "ln2b": jnp.zeros((1, D), jnp.float32),
                "wfc1": jnp.transpose(trunc_normal(next(keys), (hidden, D)), (1, 0)),
                "bfc1": jnp.zeros((1, hidden), jnp.float32),
                "wfc2": jnp.transpose(trunc_normal(next(keys), (D, hidden)), (1, 0)) * rescale,
                "bfc2": jnp.zeros((1, D), jnp.float32),
            }
            self.blocks.append(p)

        # ... and stacked along a leading layer axis for the fused kernel,
        # with the MXU weights cast to bf16 (f32 accumulation in-kernel).
        stacked = {k: jnp.stack([p[k] for p in self.blocks], axis=0)
                   for k in self.blocks[0].keys()}
        mxu_keys = {"wqkv", "wproj", "wfc1", "wfc2"}
        self.stacked_k = {k: (v.astype(jnp.bfloat16) if k in mxu_keys else v)
                          for k, v in stacked.items()}
        self.w_patch_bf16 = self.w_patch.astype(jnp.bfloat16)

        self.norm_w = jnp.ones((1, D), jnp.float32)
        self.norm_b = jnp.zeros((1, D), jnp.float32)

    def _extract_patches(self, x):
        # x: NCHW -> [B, N, C*ps*ps] with (c, kh, kw) flattening (conv order)
        B, C, H, W = x.shape
        ps = self.patch_size
        Hp, Wp = H // ps, W // ps
        xp = x.reshape(B, C, Hp, ps, Wp, ps)
        xp = jnp.transpose(xp, (0, 2, 4, 1, 3, 5))
        return xp.reshape(B, Hp * Wp, C * ps * ps)

    def __call__(self, x, masks=None):
        # TODO(synk): masks / apply_masks (token gather) and non-matching-size
        # pos-embed interpolation are not implemented; masks must be None and
        # the input spatial size must equal img_size.
        assert masks is None
        B = x.shape[0]
        assert x.shape[2] == self.img_size and x.shape[3] == self.img_size
        N, D = self.num_patches, self.embed_dim

        bt = _pick_batch_tile(B, N)
        patches = self._extract_patches(x).reshape(B * N, -1)
        tokens = run_patch_embed(
            patches, self.w_patch_bf16, self.b_patch, self.pos_embed,
            batch_tile=bt, tokens=N)
        out = run_transformer_stack(
            tokens, self.stacked_k, self.norm_w, self.norm_b,
            num_heads=self.num_heads, batch_tile=bt,
            tokens_per_sample=N, depth=self.depth)
        return out.reshape(B, N, D)

    # pure-JAX f32 reference for sanity checking
    def reference(self, x):
        B = x.shape[0]
        N, D, H = self.num_patches, self.embed_dim, self.num_heads
        hd = D // H
        patches = self._extract_patches(x)
        tok = patches @ self.w_patch + self.b_patch[0] + self.pos_embed[None]
        for p in self.blocks:
            xn = _layernorm(tok, p["ln1w"][0], p["ln1b"][0])
            qkv = xn @ p["wqkv"] + p["bqkv"][0]
            qkv = qkv.reshape(B, N, 3, H, hd)
            q = jnp.transpose(qkv[:, :, 0], (0, 2, 1, 3))
            k = jnp.transpose(qkv[:, :, 1], (0, 2, 1, 3))
            v = jnp.transpose(qkv[:, :, 2], (0, 2, 1, 3))
            a = jnp.einsum("bhnd,bhmd->bhnm", q, k) / math.sqrt(hd)
            a = jax.nn.softmax(a, axis=-1)
            y = jnp.einsum("bhnm,bhmd->bhnd", a, v)
            y = jnp.transpose(y, (0, 2, 1, 3)).reshape(B, N, D)
            tok = tok + (y @ p["wproj"] + p["bproj"][0])
            xn2 = _layernorm(tok, p["ln2w"][0], p["ln2b"][0])
            h1 = jax.nn.gelu(xn2 @ p["wfc1"] + p["bfc1"][0], approximate=False)
            tok = tok + (h1 @ p["wfc2"] + p["bfc2"][0])
        return _layernorm(tok, self.norm_w[0], self.norm_b[0])


if __name__ == "__main__":
    B, C, HW = 2, 4, 32
    key = jax.random.PRNGKey(0)
    x = jax.random.normal(key, (B, C, HW, HW), jnp.float32)  # NCHW, like PyTorch

    model = ViTPallas(img_size=HW, patch_size=8, in_chans=C, embed_dim=32,
                      depth=2, num_heads=4, mlp_ratio=4.0, seed=0)

    out = jax.block_until_ready(model(x))
    ref = model.reference(x)

    # tolerance reflects bf16 MXU operands + approx-reciprocal softmax in the
    # kernel vs. the full-f32 reference.
    np.testing.assert_allclose(np.asarray(out), np.asarray(ref),
                               rtol=2e-2, atol=2e-2)

    print("KERNEL_OK")
</pallas_src>

<mosaic_0001>
module attributes {stable_mosaic.version = 11 : i64} {
  func.func @patch_embed_kernel(%arg0: i32, %arg1: memref<16x256xf32, #tpu.memory_space<vmem>>, %arg2: memref<256x32xbf16, #tpu.memory_space<vmem>>, %arg3: memref<1x32xf32, #tpu.memory_space<vmem>>, %arg4: memref<16x32xf32, #tpu.memory_space<vmem>>, %arg5: memref<16x32xf32, #tpu.memory_space<vmem>>) attributes {dimension_semantics = [#tpu.dimension_semantics<parallel>], iteration_bounds = array<i64: 2>, scalar_prefetch = 0 : i64, scratch_operands = 0 : i64, tpu.core_type = #tpu.core_type<tc>, window_params = [{transform_indices = @transform_0, window_bounds = array<i64: 16, 256>}, {pipeline_mode = #tpu.pipeline_mode<synchronous>, transform_indices = @transform_1, window_bounds = array<i64: 256, 32>}, {pipeline_mode = #tpu.pipeline_mode<synchronous>, transform_indices = @transform_2, window_bounds = array<i64: 1, 32>}, {pipeline_mode = #tpu.pipeline_mode<synchronous>, transform_indices = @transform_3, window_bounds = array<i64: 16, 32>}, {transform_indices = @transform_4, window_bounds = array<i64: 16, 32>}]} {
    %c0 = arith.constant 0 : index
    %c0_0 = arith.constant 0 : index
    %0 = vector.load %arg1[%c0, %c0_0] : memref<16x256xf32, #tpu.memory_space<vmem>>, vector<16x256xf32>
    %1 = arith.truncf %0 : vector<16x256xf32> to vector<16x256xbf16>
    %c0_1 = arith.constant 0 : index
    %c0_2 = arith.constant 0 : index
    %2 = vector.load %arg2[%c0_1, %c0_2] : memref<256x32xbf16, #tpu.memory_space<vmem>>, vector<256x32xbf16>
    %cst = arith.constant dense<0.000000e+00> : vector<16x32xf32>
    %3 = tpu.matmul %1, %2, %cst {dimension_numbers = #tpu.dot_dimension_numbers<[1], [0], [0], [1], [0, 0, 1, 1], [], []>} : vector<16x256xbf16>, vector<256x32xbf16>, vector<16x32xf32> -> vector<16x32xf32>
    %c0_3 = arith.constant 0 : index
    %c0_4 = arith.constant 0 : index
    %4 = vector.load %arg3[%c0_3, %c0_4] : memref<1x32xf32, #tpu.memory_space<vmem>>, vector<1x32xf32>
    %5 = vector.broadcast %4 : vector<1x32xf32> to vector<16x32xf32>
    %6 = arith.addf %3, %5 : vector<16x32xf32>
    %7 = vector.shape_cast %6 : vector<16x32xf32> to vector<1x16x32xf32>
    %c0_5 = arith.constant 0 : index
    %c0_6 = arith.constant 0 : index
    %8 = vector.load %arg4[%c0_5, %c0_6] : memref<16x32xf32, #tpu.memory_space<vmem>>, vector<16x32xf32>
    %9 = vector.shape_cast %8 : vector<16x32xf32> to vector<1x16x32xf32>
    %10 = arith.addf %7, %9 : vector<1x16x32xf32>
    %11 = vector.shape_cast %10 : vector<1x16x32xf32> to vector<16x32xf32>
    %c0_7 = arith.constant 0 : index
    %c0_8 = arith.constant 0 : index
    %12 = vector.load %arg5[%c0_7, %c0_8] : memref<16x32xf32, #tpu.memory_space<vmem>>, vector<16x32xf32>
    tpu.vector_store %arg5[%c0_7, %c0_8], %11 {strides = array<i32>} : memref<16x32xf32, #tpu.memory_space<vmem>>, vector<16x32xf32>,
    return
  }
  func.func @transform_0(%arg0: i32) -> (i32, i32) {
    %c0_i32 = arith.constant 0 : i32
    %c0_i32_0 = arith.constant 0 : i32
    return %arg0, %c0_i32 : i32, i32
  }
  func.func @transform_1(%arg0: i32) -> (i32, i32) {
    %c0_i32 = arith.constant 0 : i32
    %c0_i32_0 = arith.constant 0 : i32
    %c0_i32_1 = arith.constant 0 : i32
    return %c0_i32, %c0_i32_0 : i32, i32
  }
  func.func @transform_2(%arg0: i32) -> (i32, i32) {
    %c0_i32 = arith.constant 0 : i32
    %c0_i32_0 = arith.constant 0 : i32
    %c0_i32_1 = arith.constant 0 : i32
    return %c0_i32, %c0_i32_0 : i32, i32
  }
  func.func @transform_3(%arg0: i32) -> (i32, i32) {
    %c0_i32 = arith.constant 0 : i32
    %c0_i32_0 = arith.constant 0 : i32
    %c0_i32_1 = arith.constant 0 : i32
    return %c0_i32, %c0_i32_0 : i32, i32
  }
  func.func @transform_4(%arg0: i32) -> (i32, i32) {
    %c0_i32 = arith.constant 0 : i32
    %c0_i32_0 = arith.constant 0 : i32
    return %arg0, %c0_i32 : i32, i32
  }
}

</mosaic_0001>

<llo_original>
// kernel: tpu_custom_call.1
$region0: #{tpu_custom_call.1}
  #allocation0 [shape = 'u32[]', space=smem, size = 0x4, offset = 0x4, fixed_abs, tag = 'smem constant byte address 0x4 - core index']
  #allocation1 [shape = 'u32[144,128]{1,0:T(1,128)}', space=vmem, size = 0x12000, scoped, tag = 'internal scratch']
  %s0 = inlined_call_operand.vmem [shape: f32[32,256], index: 0, kind: input, shape index: {}]
  %s1 = inlined_call_operand.vmem [shape: bf16[256,32], index: 1, kind: input, shape index: {}]
  %s2 = inlined_call_operand.vmem [shape: f32[1,32], index: 2, kind: input, shape index: {}]
  %s3 = inlined_call_operand.vmem [shape: f32[16,32], index: 3, kind: input, shape index: {}]
  %s4 = inlined_call_operand.hbm [shape: f32[32,32], index: 4, kind: output, shape index: {}]
  %s5 = sld [smem:[#allocation0]]
  $region49: #{tpu_custom_call.1} parent=0
    _
  %s7 = ssub.s32 1, %s5
  %s8 = scalar_select 0, %s7, %s5
  $region1: #{tpu_custom_call.1} parent=0
    #allocation2 [shape = 'u8[16384]{0}', space=vmem, size = 0x4000, scoped, tag = 'output window, operand 0']
    #allocation3 [shape = 's32[2]{0}', space=sflag, size = 0x8, scoped, tag = 'scoped memory for tpu_custom_call.1']
    %9 = vsyncpa [#allocation3], 0
    %s10 = scalar_lea.sflag [#allocation3], 1
    %11 = vsyncpa %s10, 0
    loop: start=0, step=1, limit=4
    $region2: #{tpu_custom_call.1} parent=1 // loop_pre_header
      _
    $region3: #{tpu_custom_call.1} parent=1 // loop_header
      %s13 = sphi 0, %s17
      %p14 = scmp.ge.s32.totalorder %s13, 4
      %s23 = sphi 0, %s25
      %s26 = sphi 0, %s23
      %s27 = sphi 0, %s26
      %s43 = sphi 0, %s27
      %s47 = sphi 0, %s47
      %s49 = sphi 0, %s47
      %s50 = sphi 0, %s49
      %s64 = sphi 0, %s50
      %s68 = sphi 0, %s68
      %s70 = sphi 0, %s68
      %s71 = sphi 0, %s70
      %s85 = sphi 0, %s71
      %s89 = sphi 0, %s89
      %s91 = sphi 0, %s89
      %s92 = sphi 0, %s91
      %s106 = sphi 0, %s92
      %s112 = sphi 0, %s114
      %s115 = sphi 0, %s112
      %s116 = sphi 0, %s115
      %s132 = sphi 0, %s116
    $region4: #{tpu_custom_call.1} parent=1 // loop_header_branch
      %16 = sbr.rel (%p14) target = $region8
    $region5: #{tpu_custom_call.1} parent=1 // loop_body
      %s18 = ssub.s32 %s13, 1
      %s19 = ssub.s32 %s13, 2
      %s20 = sadd.s32 %s13, 1
      %s21 = ssub.s32 %s13, %s20
      %p22 = scmp.eq.s32.totalorder %s21, 0
      %s24 = sadd.s32 %s23, 1
      %s25 = scalar_select %p22, %s23, %s24
      %p28 = pneg %p22
      %p29 = scmp.eq.s32.totalorder %s13, 1
      %p30 = por %p28, %p29
      %p31 = scmp.ne.s32.totalorder %s23, %s26
      %p32 = scmp.eq.s32.totalorder %s13, 0
      %p33 = por %p31, %p32
      %p34 = scmp.ne.s32.totalorder %s23, %s26
      %p35 = scmp.eq.s32.totalorder %s18, 1
      %p36 = por %p34, %p35
      %p37 = scmp.ne.s32.totalorder %s26, %s27
      %p38 = scmp.eq.s32.totalorder %s18, 0
      %p39 = por %p37, %p38
      %p40 = scmp.ne.s32.totalorder %s26, %s27
      %p41 = scmp.eq.s32.totalorder %s19, 1
      %p42 = por %p40, %p41
      %p44 = scmp.ne.s32.totalorder %s27, %s43
      %p45 = scmp.eq.s32.totalorder %s19, 0
      %p46 = por %p44, %p45
      %s48 = sadd.s32 %s47, 1
      %p51 = scmp.eq.s32.totalorder %s13, 1
      %p52 = scmp.ne.s32.totalorder %s47, %s49
      %p53 = scmp.eq.s32.totalorder %s13, 0
      %p54 = por %p52, %p53
      %p55 = scmp.ne.s32.totalorder %s47, %s49
      %p56 = scmp.eq.s32.totalorder %s18, 1
      %p57 = por %p55, %p56
      %p58 = scmp.ne.s32.totalorder %s49, %s50
      %p59 = scmp.eq.s32.totalorder %s18, 0
      %p60 = por %p58, %p59
      %p61 = scmp.ne.s32.totalorder %s49, %s50
      %p62 = scmp.eq.s32.totalorder %s19, 1
      %p63 = por %p61, %p62
      %p65 = scmp.ne.s32.totalorder %s50, %s64
      %p66 = scmp.eq.s32.totalorder %s19, 0
      %p67 = por %p65, %p66
      %s69 = sadd.s32 %s68, 1
      %p72 = scmp.eq.s32.totalorder %s13, 1
      %p73 = scmp.ne.s32.totalorder %s68, %s70
      %p74 = scmp.eq.s32.totalorder %s13, 0
      %p75 = por %p73, %p74
      %p76 = scmp.ne.s32.totalorder %s68, %s70
      %p77 = scmp.eq.s32.totalorder %s18, 1
      %p78 = por %p76, %p77
      %p79 = scmp.ne.s32.totalorder %s70, %s71
      %p80 = scmp.eq.s32.totalorder %s18, 0
      %p81 = por %p79, %p80
      %p82 = scmp.ne.s32.totalorder %s70, %s71
      %p83 = scmp.eq.s32.totalorder %s19, 1
      %p84 = por %p82, %p83
      %p86 = scmp.ne.s32.totalorder %s71, %s85
      %p87 = scmp.eq.s32.totalorder %s19, 0
      %p88 = por %p86, %p87
      %s90 = sadd.s32 %s89, 1
      %p93 = scmp.eq.s32.totalorder %s13, 1
      %p94 = scmp.ne.s32.totalorder %s89, %s91
      %p95 = scmp.eq.s32.totalorder %s13, 0
      %p96 = por %p94, %p95
      %p97 = scmp.ne.s32.totalorder %s89, %s91
      %p98 = scmp.eq.s32.totalorder %s18, 1
      %p99 = por %p97, %p98
      %p100 = scmp.ne.s32.totalorder %s91, %s92
      %p101 = scmp.eq.s32.totalorder %s18, 0
      %p102 = por %p100, %p101
      %p103 = scmp.ne.s32.totalorder %s91, %s92
      %p104 = scmp.eq.s32.totalorder %s19, 1
      %p105 = por %p103, %p104
      %p107 = scmp.ne.s32.totalorder %s92, %s106
      %p108 = scmp.eq.s32.totalorder %s19, 0
      %p109 = por %p107, %p108
      %s110 = ssub.s32 %s13, %s20
      %p111 = scmp.eq.s32.totalorder %s110, 0
      %s113 = sadd.s32 %s112, 1
      %s114 = scalar_select %p111, %s112, %s113
      %p117 = pneg %p111
      %p118 = scmp.eq.s32.totalorder %s13, 1
      %p119 = por %p117, %p118
      %p120 = scmp.ne.s32.totalorder %s112, %s115
      %p121 = scmp.eq.s32.totalorder %s13, 0
      %p122 = por %p120, %p121
      %p123 = scmp.ne.s32.totalorder %s112, %s115
      %p124 = scmp.eq.s32.totalorder %s18, 1
      %p125 = por %p123, %p124
      %p126 = scmp.ne.s32.totalorder %s115, %s116
      %p127 = scmp.eq.s32.totalorder %s18, 0
      %p128 = por %p126, %p127
      %p129 = scmp.ne.s32.totalorder %s115, %s116
      %p130 = scmp.eq.s32.totalorder %s19, 1
      %p131 = por %p129, %p130
      %p133 = scmp.ne.s32.totalorder %s116, %s132
      %p134 = scmp.eq.s32.totalorder %s19, 0
      %p135 = por %p133, %p134
      %p136 = scmp.le.s32.totalorder 1, %s13
      %p137 = scmp.lt.s32.totalorder %s13, 3
      %p138 = pnand %p136, %p137
      %p139 = pneg %p138
      // Predicated region
      $region9: #{tpu_custom_call.1} parent=5 // pred_check
        _
      $region10: #{tpu_custom_call.1} parent=5 // pred_check_branch
        %141 = sbr.rel (%p138) target = $region12
      $region11: #{tpu_custom_call.1} parent=5 // pred_region
        %s142 = ssub.s32 %s13, 1
        // Predicated region
        $region13: #{tpu_custom_call.1} parent=11 // pred_check
          %p143 = pneg %p60
        $region14: #{tpu_custom_call.1} parent=11 // pred_check_branch
          %145 = sbr.rel (%p143) target = $region16
        $region15: #{tpu_custom_call.1} parent=11 // pred_region
          _
        $region16: #{tpu_custom_call.1} parent=11 // pred_fallthru
          _
        // Predicated region
        $region17: #{tpu_custom_call.1} parent=11 // pred_check
          %p146 = pneg %p81
        $region18: #{tpu_custom_call.1} parent=11 // pred_check_branch
          %148 = sbr.rel (%p146) target = $region20
        $region19: #{tpu_custom_call.1} parent=11 // pred_region
          _
        $region20: #{tpu_custom_call.1} parent=11 // pred_fallthru
          _
        // Predicated region
        $region21: #{tpu_custom_call.1} parent=11 // pred_check
          %p149 = pneg %p102
        $region22: #{tpu_custom_call.1} parent=11 // pred_check_branch
          %151 = sbr.rel (%p149) target = $region24
        $region23: #{tpu_custom_call.1} parent=11 // pred_region
          _
        $region24: #{tpu_custom_call.1} parent=11 // pred_fallthru
          _
      $region12: #{tpu_custom_call.1} parent=5 // pred_fallthru
        _
      %p152 = scmp.lt.s32.totalorder %s13, 2
      // Predicated region
      $region25: #{tpu_custom_call.1} parent=5 // pred_check
        %p153 = pneg %p152
      $region26: #{tpu_custom_call.1} parent=5 // pred_check_branch
        %155 = sbr.rel (%p153) target = $region28
      $region27: #{tpu_custom_call.1} parent=5 // pred_region
        // Predicated region
        $region29: #{tpu_custom_call.1} parent=27 // pred_check
          %p156 = pneg %p33
        $region30: #{tpu_custom_call.1} parent=27 // pred_check_branch
          %158 = sbr.rel (%p156) target = $region32
        $region31: #{tpu_custom_call.1} parent=27 // pred_region
          %s159 = smul.u32 2, %s13
          %p160 = scmp.lt.s32.totalorder %s159, 3
          %s161 = scalar_select %p160, %s159, 3
          %s162 = smul.addr %s161, 2
          %s163 = smul.addr %s162, 8
          %s164 = scalar_lea.vmem %s0, %s163
          %s165 = smul.u32 2, %s13
        $region32: #{tpu_custom_call.1} parent=27 // pred_fallthru
          _
      $region28: #{tpu_custom_call.1} parent=5 // pred_fallthru
        _
      %p166 = scmp.le.s32.totalorder 1, %s13
      %p167 = scmp.lt.s32.totalorder %s13, 3
      %p168 = pnand %p166, %p167
      %p169 = pneg %p168
      // Predicated region
      $region33: #{tpu_custom_call.1} parent=5 // pred_check
        _
      $region34: #{tpu_custom_call.1} parent=5 // pred_check_branch
        %171 = sbr.rel (%p168) target = $region36
      $region35: #{tpu_custom_call.1} parent=5 // pred_region
        %s172 = ssub.s32 %s13, 1
        %s173 = smul.u32 2, %s18
        %p174 = scmp.lt.s32.totalorder %s173, 3
        %s175 = scalar_select %p174, %s173, 3
        %s176 = smul.addr %s175, 2
        %s177 = smul.addr %s176, 8
        %s178 = scalar_lea.vmem %s0, %s177
        %p179 = pneg %p39
        %p180 = pneg %p36
        %p181 = pneg %p60
        %p182 = pneg %p57
        %p183 = pneg %p81
        %p184 = pneg %p78
        %p185 = pneg %p102
        %p186 = pneg %p99
        %p187 = pneg %p128
        %p188 = pneg %p125
        %s189 = sand.u32 %s115, 1
        %s190 = scalar_lea.sflag [#allocation3], %s189
        %s191 = sand.u32 %s115, 1
        %s192 = smul.addr %s191, 16
        %s193 = scalar_lea.vmem [#allocation2], %s192
        %s194 = smul.u32 2, %s18
        %p195 = scmp.lt.s32.totalorder %s194, 3
        %s196 = scalar_select %p195, %s194, 3
        %s197 = smul.addr %s196, 2
        %s198 = smul.addr %s197, 8
        %s199 = scalar_lea.vmem %s0, %s198
        %s200 = smul.u32 2, %s18
        %s201 = smul.u32 2, %s18
        %v203 = vld [vmem:[%s199] sm:$0xff]
        %v204 = vld [vmem:[%s199 + $0x8] sm:$0xff]
        %v205 = vld [vmem:[%s199 + $0x10] sm:$0xff]
        %v206 = vld [vmem:[%s199 + $0x18] sm:$0xff]
        %v207 = vpack.c.bf16 %v205, %v203
        %v208 = vpack.c.bf16 %v206, %v204
        %v209 = vld [vmem:[%s1] sm:$0xf]
        %v210 = vld [vmem:[%s1 + $0x4] sm:$0xf]
        %v211 = vld [vmem:[%s1 + $0x8] sm:$0xf]
        %v212 = vld [vmem:[%s1 + $0xc] sm:$0xf]
        %v213 = vld [vmem:[%s1 + $0x10] sm:$0xf]
        %v214 = vld [vmem:[%s1 + $0x14] sm:$0xf]
        %v215 = vld [vmem:[%s1 + $0x18] sm:$0xf]
        %v216 = vld [vmem:[%s1 + $0x1c] sm:$0xf]
        %v217 = vld [vmem:[%s1 + $0x20] sm:$0xf]
        %v218 = vld [vmem:[%s1 + $0x24] sm:$0xf]
        %v219 = vld [vmem:[%s1 + $0x28] sm:$0xf]
        %v220 = vld [vmem:[%s1 + $0x2c] sm:$0xf]
        %v221 = vld [vmem:[%s1 + $0x30] sm:$0xf]
        %v222 = vld [vmem:[%s1 + $0x34] sm:$0xf]
        %v223 = vld [vmem:[%s1 + $0x38] sm:$0xf]
        %v224 = vld [vmem:[%s1 + $0x3c] sm:$0xf]
        %v225 = vld [vmem:[%s1 + $0x40] sm:$0xf]
        %v226 = vld [vmem:[%s1 + $0x44] sm:$0xf]
        %v227 = vld [vmem:[%s1 + $0x48] sm:$0xf]
        %v228 = vld [vmem:[%s1 + $0x4c] sm:$0xf]
        %v229 = vld [vmem:[%s1 + $0x50] sm:$0xf]
        %v230 = vld [vmem:[%s1 + $0x54] sm:$0xf]
        %v231 = vld [vmem:[%s1 + $0x58] sm:$0xf]
        %v232 = vld [vmem:[%s1 + $0x5c] sm:$0xf]
        %v233 = vld [vmem:[%s1 + $0x60] sm:$0xf]
        %v234 = vld [vmem:[%s1 + $0x64] sm:$0xf]
        %v235 = vld [vmem:[%s1 + $0x68] sm:$0xf]
        %v236 = vld [vmem:[%s1 + $0x6c] sm:$0xf]
        %v237 = vld [vmem:[%s1 + $0x70] sm:$0xf]
        %v238 = vld [vmem:[%s1 + $0x74] sm:$0xf]
        %v239 = vld [vmem:[%s1 + $0x78] sm:$0xf]
        %v240 = vld [vmem:[%s1 + $0x7c] sm:$0xf]
        %v241 = vld [vmem:[%s2] sm:$0x1]
        %v243 = vlaneseq
        %v244 = vshrl.u32 %v243, 7
        %v245 = vsub.s32 0, %v244
        %v246 = vrot.slane %v241, %v245
        %v280 = vunpack.c.l.b16 %v209
        %v281 = vunpack.c.l.b16 %v210
        %v282 = vunpack.c.l.b16 %v211
        %v283 = vunpack.c.l.b16 %v212
        %v284 = vunpack.c.l.b16 %v213
        %v285 = vunpack.c.l.b16 %v214
        %v286 = vunpack.c.l.b16 %v215
        %v287 = vunpack.c.l.b16 %v216
        %v288 = vunpack.c.l.b16 %v217
        %v289 = vunpack.c.l.b16 %v218
        %v290 = vunpack.c.l.b16 %v219
        %v291 = vunpack.c.l.b16 %v220
        %v292 = vunpack.c.l.b16 %v221
        %v293 = vunpack.c.l.b16 %v222
        %v294 = vunpack.c.l.b16 %v223
        %v295 = vunpack.c.l.b16 %v224
        %v296 = vunpack.c.l.b16 %v225
        %v297 = vunpack.c.l.b16 %v226
        %v298 = vunpack.c.l.b16 %v227
        %v299 = vunpack.c.l.b16 %v228
        %v300 = vunpack.c.l.b16 %v229
        %v301 = vunpack.c.l.b16 %v230
        %v302 = vunpack.c.l.b16 %v231
        %v303 = vunpack.c.l.b16 %v232
        %v304 = vunpack.c.l.b16 %v233
        %v305 = vunpack.c.l.b16 %v234
        %v306 = vunpack.c.l.b16 %v235
        %v307 = vunpack.c.l.b16 %v236
        %v308 = vunpack.c.l.b16 %v237
        %v309 = vunpack.c.l.b16 %v238
        %v310 = vunpack.c.l.b16 %v239
        %v311 = vunpack.c.l.b16 %v240
        %v312 = vpack.c.b16 %v281, %v280
        %v313 = vpack.c.b16 %v283, %v282
        %v314 = vpack.c.b16 %v285, %v284
        %v315 = vpack.c.b16 %v287, %v286
        %v316 = vpack.c.b16 %v289, %v288
        %v317 = vpack.c.b16 %v291, %v290
        %v318 = vpack.c.b16 %v293, %v292
        %v319 = vpack.c.b16 %v295, %v294
        %v320 = vpack.c.b16 %v297, %v296
        %v321 = vpack.c.b16 %v299, %v298
        %v322 = vpack.c.b16 %v301, %v300
        %v323 = vpack.c.b16 %v303, %v302
        %v324 = vpack.c.b16 %v305, %v304
        %v325 = vpack.c.b16 %v307, %v306
        %v326 = vpack.c.b16 %v309, %v308
        %v327 = vpack.c.b16 %v311, %v310
        %344 = vmatprep.subr.bf16.mxu0 0
        %345 = vmatpush1.bf16.msra.mxu0 %v312
        %346 = vmatprep.subr.bf16.mxu0 0
        %347 = vmatpush1.bf16.msra.mxu0 %v313
        %348 = vmatprep.subr.bf16.mxu0 0
        %349 = vmatpush1.bf16.msra.mxu0 %v314
        %350 = vmatprep.subr.bf16.mxu0 0
        %351 = vmatpush1.bf16.msra.mxu0 %v315
        %352 = vmatprep.subr.bf16.mxu0 0
        %353 = vmatpush1.bf16.msra.mxu0 %v316
        %354 = vmatprep.subr.bf16.mxu0 0
        %355 = vmatpush1.bf16.msra.mxu0 %v317
        %356 = vmatprep.subr.bf16.mxu0 0
        %357 = vmatpush1.bf16.msra.mxu0 %v318
        %358 = vmatprep.subr.bf16.mxu0 0
        %359 = vmatpush1.bf16.msra.mxu0 %v319
        %360 = vmatprep.subr.bf16.mxu0 0
        %361 = vmatpush1.bf16.msra.mxu0 %v320
        %362 = vmatprep.subr.bf16.mxu0 0
        %363 = vmatpush1.bf16.msra.mxu0 %v321
        %364 = vmatprep.subr.bf16.mxu0 0
        %365 = vmatpush1.bf16.msra.mxu0 %v322
        %366 = vmatprep.subr.bf16.mxu0 0
        %367 = vmatpush1.bf16.msra.mxu0 %v323
        %368 = vmatprep.subr.bf16.mxu0 0
        %369 = vmatpush1.bf16.msra.mxu0 %v324
        %370 = vmatprep.subr.bf16.mxu0 0
        %371 = vmatpush1.bf16.msra.mxu0 %v325
        %372 = vmatprep.subr.bf16.mxu0 0
        %373 = vmatpush1.bf16.msra.mxu0 %v326
        %374 = vmatprep.subr.bf16.mxu0 0
        %375 = vmatpush1.bf16.msra.mxu0 %v327
        %376 = vmatprep.mubr.bf16.mxu0 %v208
        %377 = vmatmul.mubr.bf16.gmra.mrb[0].mxu0 %v207
        %v378 = vpop.f32.mrb[0].mxu0
        %v379 = vadd.f32 %v246, %v378
        %v380 = vpop.f32.mrb[0].mxu0
        %v381 = vpop.f32.mrb[0].mxu0
        %v382 = vadd.f32 %v246, %v381
        %v383 = vpop.f32.mrb[0].mxu0
        %384 = vdwg.mxu0
        %v385 = vld [vmem:[%s3] sm:$0xff]
        %v386 = vld [vmem:[%s3 + $0x8] sm:$0xff]
        %v387 = vadd.f32 %v379, %v385
        %v388 = vadd.f32 %v382, %v386
        %vm389 = vcmask 261120
        %390 = vst.msk [vmem:[%s193] sm:$0xff] %vm389, %v387
        %391 = vst.msk [vmem:[%s193 + $0x8] sm:$0xff] %vm389, %v388
        %s392 = sand.u32 %s115, 1
        %s393 = scalar_lea.sflag [#allocation3], %s392
        %s394 = sand.u32 %s115, 1
        %s395 = smul.addr %s394, 16
        %s396 = scalar_lea.vmem [#allocation2], %s395
        // Predicated region
        $region37: #{tpu_custom_call.1} parent=35 // pred_check
          %p397 = pneg %p125
        $region38: #{tpu_custom_call.1} parent=35 // pred_check_branch
          %399 = sbr.rel (%p397) target = $region40
        $region39: #{tpu_custom_call.1} parent=35 // pred_region
          %s400 = smul.u32 2, %s18
          %s402 = ssub.s32 256, 256
          %403 = vsyncadd %s393, %s402
          %s404 = smul.addr %s400, 128
          %s405 = scalar_lea.hbm %s4, %s404
          %s406 = sshll.u32 %s396, 4
          %s407 = int_to_ptr.vmem [resolvable:$true] %s406
          %412 = dma.vmem_to_hbm [thread:$0]  %s407, 256, %s405, %s393, 128, 128, 8
        $region40: #{tpu_custom_call.1} parent=35 // pred_fallthru
          _
      $region36: #{tpu_custom_call.1} parent=5 // pred_fallthru
        _
      %p413 = scmp.le.s32.totalorder 2, %s13
      // Predicated region
      $region41: #{tpu_custom_call.1} parent=5 // pred_check
        %p414 = pneg %p413
      $region42: #{tpu_custom_call.1} parent=5 // pred_check_branch
        %416 = sbr.rel (%p414) target = $region44
      $region43: #{tpu_custom_call.1} parent=5 // pred_region
        %s417 = ssub.s32 %s13, 2
        // Predicated region
        $region45: #{tpu_custom_call.1} parent=43 // pred_check
          %p418 = pneg %p131
        $region46: #{tpu_custom_call.1} parent=43 // pred_check_branch
          %420 = sbr.rel (%p418) target = $region48
        $region47: #{tpu_custom_call.1} parent=43 // pred_region
          %s421 = sand.u32 %s116, 1
          %s422 = scalar_lea.sflag [#allocation3], %s421
          %s423 = sand.u32 %s116, 1
          %s424 = smul.addr %s423, 16
          %s425 = scalar_lea.vmem [#allocation2], %s424
          %426 = dma.done %s422, 256
        $region48: #{tpu_custom_call.1} parent=43 // pred_fallthru
          _
      $region44: #{tpu_custom_call.1} parent=5 // pred_fallthru
        _
    $region6: #{tpu_custom_call.1} parent=1 // loop_footer
      %s17 = sadd.s32 1, %s13
    $region7: #{tpu_custom_call.1} parent=1 // loop_footer_branch
      %12 = sbr.rel target = $region3
    $region8: #{tpu_custom_call.1} parent=1 // loop_exit
      _
    %427 = vsyncpa [#allocation3], 1
    %s428 = scalar_lea.sflag [#allocation3], 1
    %429 = vsyncpa %s428, 1

</llo_original>
